<compile_context>
chip_gen: v7x
topology: tpu7x:2x2x1
jax: 0.10.0
libtpu: 0.0.40
codegen_flags: <defaults>
</compile_context>

<pallas_src>
from functools import partial

import numpy as np
import jax
import jax.numpy as jnp
from jax.experimental import pallas as pl
from jax.experimental.pallas import tpu as pltpu


# ----------------------------- parameter setup (plain numpy / JAX glue) ------

def dct_mat(size: int) -> np.ndarray:
    m = [[(np.sqrt(1.0 / size) if i == 0 else np.sqrt(2.0 / size))
          * np.cos((j + 0.5) * np.pi * i / size)
          for j in range(size)] for i in range(size)]
    return np.asarray(m, dtype=np.float32)


def generate_filter(start, end, size: int) -> np.ndarray:
    return np.asarray(
        [[0.0 if (i + j > end or i + j < start) else 1.0 for j in range(size)]
         for i in range(size)],
        dtype=np.float32,
    )


def norm_sigma(x):
    return 2.0 * jax.nn.sigmoid(x) - 1.0


def make_fad_params(size: int, key):
    """Returns D [S,S], D^T [S,S] and the 3 effective band filters [3,S,S]."""
    d = jnp.asarray(dct_mat(size))
    dt = d.T

    # band boundaries exactly as in the PyTorch __init__ (float floor-division)
    bands = [
        (0.0, size // 2.82),
        (size // 2.82, size // 2),
        (size // 2, size * 2),
    ]
    bases = jnp.stack([jnp.asarray(generate_filter(s, e, size)) for s, e in bands])

    # learnable filters: deterministic init ~ N(0, 0.1) (synthetic, no checkpoint)
    keys = jax.random.split(key, 3)
    learnables = jnp.stack(
        [0.1 * jax.random.normal(k, (size, size), dtype=jnp.float32) for k in keys])
    filters = bases + norm_sigma(learnables)   # Filter.forward (use_learnable, no norm)
    return d, dt, filters


# ----------------------------- Pallas kernels --------------------------------

def _fad_kron_kernel(x_ref, m1_ref, m2_ref, filt_ref, o_ref, *, compute_dtype):
    # x_ref   : [B, 3, 1, S*S]  lane-dense flattened images (RGB only)
    # m1_ref  : [S*S, S*S]      kron(D, D)^T   (compute_dtype)
    # m2_ref  : [S*S, S*S]      kron(D, D)     (compute_dtype)
    # filt_ref: [3, S*S]        flattened band filters (f32)
    # o_ref   : [B, 3, S*S]
    r = x_ref[:, 0, 0, :]
    g = x_ref[:, 1, 0, :]
    b = x_ref[:, 2, 0, :]
    gray = 0.299 * r + 0.587 * g + 0.114 * b                      # [B, S*S] f32

    m1 = m1_ref[...]
    m2 = m2_ref[...]

    # vec(D @ gray @ D^T) for the whole image block: one MXU call (K=N=S*S).
    x_freq = jnp.dot(gray.astype(compute_dtype), m1,
                     preferred_element_type=jnp.float32)          # [B, S*S] f32

    for band in range(3):                                         # static unroll
        x_pass = x_freq * filt_ref[band:band + 1, :]              # band filter (VPU, f32)
        # vec(D^T @ x_pass @ D) for the whole block: one MXU call per band.
        y = jnp.dot(x_pass.astype(compute_dtype), m2,
                    preferred_element_type=jnp.float32)           # [B, S*S] f32
        o_ref[:, band, :] = y.astype(o_ref.dtype)


def _fad_large_kernel(x_ref, d_ref, dt_ref, filt_ref, o_ref):
    # Fallback for large S: per-image S x S matmuls are already MXU-sized.
    x = x_ref[0]                                          # [C, S, S]
    gray = 0.299 * x[0] + 0.587 * x[1] + 0.114 * x[2]     # [S, S]
    d = d_ref[...]
    dt = dt_ref[...]
    x_freq = jnp.dot(jnp.dot(d, gray, preferred_element_type=jnp.float32), dt,
                     preferred_element_type=jnp.float32)
    for i in range(3):
        x_pass = x_freq * filt_ref[i]
        y = jnp.dot(jnp.dot(dt, x_pass, preferred_element_type=jnp.float32), d,
                    preferred_element_type=jnp.float32)
        o_ref[0, i] = y.astype(o_ref.dtype)


def _fad_head_large(x, d, dt, filters):
    n, c, s, _ = x.shape
    return pl.pallas_call(
        _fad_large_kernel,
        out_shape=jax.ShapeDtypeStruct((n, 3, s, s), x.dtype),
        grid=(n,),
        in_specs=[
            pl.BlockSpec((1, c, s, s), lambda b: (b, 0, 0, 0)),
            pl.BlockSpec((s, s), lambda b: (0, 0)),
            pl.BlockSpec((s, s), lambda b: (0, 0)),
            pl.BlockSpec((3, s, s), lambda b: (0, 0, 0)),
        ],
        out_specs=pl.BlockSpec((1, 3, s, s), lambda b: (b, 0, 0, 0)),
        compiler_params=pltpu.CompilerParams(dimension_semantics=("parallel",)),
    )(x, d, dt, filters)


# ----------------------------- wrapper ---------------------------------------

def _pick_block_batch(n: int, ss: int, budget_bytes: int = 8 << 20) -> int:
    """Largest batch-block that fits a VMEM budget, preferring >=2 grid blocks."""
    per_img = 2 * 2 * 3 * ss * 4            # double-buffered f32 in + out per image
    cap = max(1, budget_bytes // per_img)
    divisors = [b for b in range(1, n + 1) if n % b == 0 and b <= cap]
    multi = [b for b in divisors if n // b >= 2]   # keep both TensorCores busy (v7x)
    return max(multi) if multi else max(divisors)


def fad_head(x, d, dt, filters, *, use_bf16=True, block_batch=None):
    """x: [N, C>=3, S, S] float32 (NCHW) -> [N, 3, S, S] float32."""
    n, c, s, _ = x.shape
    assert c >= 3, "FAD_Head needs at least 3 (RGB) channels; extras are ignored"
    ss = s * s

    if ss > 64 * 64:
        # TODO(synk): kron matrices are [S^2, S^2] and stop fitting in VMEM for
        # large S (the paper uses S=299); use the per-image kernel there.
        return _fad_head_large(x, d, dt, filters)

    compute_dtype = jnp.bfloat16 if use_bf16 else jnp.float32
    cbytes = jnp.dtype(compute_dtype).itemsize

    # DCT sandwiches as single matmuls on row-major flattened images:
    #   vec(D G D^T) = vec(G) @ kron(D,D)^T ,  vec(D^T X D) = vec(X) @ kron(D,D)
    kk = jnp.kron(d, d)                               # [S*S, S*S]
    m1 = kk.T.astype(compute_dtype)
    m2 = kk.astype(compute_dtype)
    filt_flat = filters.reshape(3, ss).astype(jnp.float32)

    # Free row-major reshape: channel becomes a *leading* block axis (only the 3
    # RGB channels get DMA'd even when C > 3) and the minor dim becomes S*S.
    x_r = x.reshape(n, c, 1, ss)

    bb = block_batch if block_batch is not None else _pick_block_batch(n, ss)
    assert n % bb == 0, "block_batch must divide the batch size"
    grid = (n // bb,)

    # Explicit VMEM budgeting; raise the scoped limit only when needed, staying
    # well inside v7x's 64 MiB physical VMEM (v5e/v6e have 128 MiB).
    img_block_bytes = bb * 3 * ss * 4
    const_bytes = 2 * ss * ss * cbytes + 3 * ss * 4
    vmem_est = 2 * 2 * img_block_bytes + 2 * const_bytes + (1 << 20)
    cp_kwargs = dict(dimension_semantics=("parallel",))
    if vmem_est > (24 << 20):
        cp_kwargs["vmem_limit_bytes"] = int(min(2 * vmem_est, 48 << 20))

    cost = pl.CostEstimate(
        flops=int(n * (8 * ss * ss + 8 * ss)),
        transcendentals=0,
        bytes_accessed=int(2 * n * 3 * ss * 4 + 2 * ss * ss * cbytes + 3 * ss * 4),
    )

    out_flat = pl.pallas_call(
        partial(_fad_kron_kernel, compute_dtype=compute_dtype),
        out_shape=jax.ShapeDtypeStruct((n, 3, ss), x.dtype),
        grid=grid,
        in_specs=[
            pl.BlockSpec((bb, 3, 1, ss), lambda i: (i, 0, 0, 0)),   # RGB image block
            pl.BlockSpec((ss, ss), lambda i: (0, 0)),               # kron(D,D)^T
            pl.BlockSpec((ss, ss), lambda i: (0, 0)),               # kron(D,D)
            pl.BlockSpec((3, ss), lambda i: (0, 0)),                # band filters
        ],
        out_specs=pl.BlockSpec((bb, 3, ss), lambda i: (i, 0, 0)),
        compiler_params=pltpu.CompilerParams(**cp_kwargs),
        cost_estimate=cost,
    )(x_r, m1, m2, filt_flat)

    return out_flat.reshape(n, 3, s, s)               # free reshape back to NCHW


# ----------------------------- pure-JAX reference (for sanity) ---------------

def fad_head_ref(x, d, dt, filters):
    gray = 0.299 * x[:, 0] + 0.587 * x[:, 1] + 0.114 * x[:, 2]    # [N,S,S]
    gray = gray[:, None]                                           # [N,1,S,S]
    x_freq = d @ gray @ dt
    ys = [dt @ (x_freq * filters[i]) @ d for i in range(3)]
    return jnp.concatenate(ys, axis=1)


# ----------------------------- main -------------------------------------------

if __name__ == "__main__":
    size = 16        # spatial S  (FAD_Head(size)); small test shape
    batch = 4
    channels = 4     # extra non-RGB channel: must be ignored (and not DMA'd)

    key = jax.random.PRNGKey(0)
    k_param, k_x = jax.random.split(key)

    d, dt, filters = make_fad_params(size, k_param)
    x = jax.random.normal(k_x, (batch, channels, size, size), dtype=jnp.float32)

    with jax.default_matmul_precision("highest"):
        ref = fad_head_ref(x, d, dt, filters)
    ref = np.asarray(jax.block_until_ready(ref))

    # fp32 MXU path: tight check against the reference
    out_f32 = jax.block_until_ready(fad_head(x, d, dt, filters, use_bf16=False))
    np.testing.assert_allclose(np.asarray(out_f32), ref, rtol=2e-4, atol=2e-4)

    # bf16-operand MXU path (f32 accumulation): looser check (small expected drift)
    out_bf16 = jax.block_until_ready(fad_head(x, d, dt, filters, use_bf16=True))
    np.testing.assert_allclose(np.asarray(out_bf16), ref, rtol=5e-2, atol=1.5e-1)

    assert out_f32.shape == (batch, 3, size, size)
    print("KERNEL_OK")
</pallas_src>

<mosaic_0001>
module attributes {stable_mosaic.version = 11 : i64} {
  func.func @_fad_kron_kernel(%arg0: i32, %arg1: memref<2x3x1x256xf32, #tpu.memory_space<vmem>>, %arg2: memref<256x256xf32, #tpu.memory_space<vmem>>, %arg3: memref<256x256xf32, #tpu.memory_space<vmem>>, %arg4: memref<3x256xf32, #tpu.memory_space<vmem>>, %arg5: memref<2x3x256xf32, #tpu.memory_space<vmem>>) attributes {dimension_semantics = [#tpu.dimension_semantics<parallel>], iteration_bounds = array<i64: 2>, scalar_prefetch = 0 : i64, scratch_operands = 0 : i64, tpu.core_type = #tpu.core_type<tc>, window_params = [{transform_indices = @transform_0, window_bounds = array<i64: 2, 3, 1, 256>}, {pipeline_mode = #tpu.pipeline_mode<synchronous>, transform_indices = @transform_1, window_bounds = array<i64: 256, 256>}, {pipeline_mode = #tpu.pipeline_mode<synchronous>, transform_indices = @transform_2, window_bounds = array<i64: 256, 256>}, {pipeline_mode = #tpu.pipeline_mode<synchronous>, transform_indices = @transform_3, window_bounds = array<i64: 3, 256>}, {transform_indices = @transform_4, window_bounds = array<i64: 2, 3, 256>}]} {
    %c0 = arith.constant 0 : index
    %c0_0 = arith.constant 0 : index
    %c0_1 = arith.constant 0 : index
    %c0_2 = arith.constant 0 : index
    %0 = vector.load %arg1[%c0, %c0_0, %c0_1, %c0_2] : memref<2x3x1x256xf32, #tpu.memory_space<vmem>>, vector<2x1x1x256xf32>
    %1 = vector.shape_cast %0 : vector<2x1x1x256xf32> to vector<2x256xf32>
    %c0_3 = arith.constant 0 : index
    %c1 = arith.constant 1 : index
    %c0_4 = arith.constant 0 : index
    %c0_5 = arith.constant 0 : index
    %2 = vector.load %arg1[%c0_3, %c1, %c0_4, %c0_5] : memref<2x3x1x256xf32, #tpu.memory_space<vmem>>, vector<2x1x1x256xf32>
    %3 = vector.shape_cast %2 : vector<2x1x1x256xf32> to vector<2x256xf32>
    %c0_6 = arith.constant 0 : index
    %c2 = arith.constant 2 : index
    %c0_7 = arith.constant 0 : index
    %c0_8 = arith.constant 0 : index
    %4 = vector.load %arg1[%c0_6, %c2, %c0_7, %c0_8] : memref<2x3x1x256xf32, #tpu.memory_space<vmem>>, vector<2x1x1x256xf32>
    %5 = vector.shape_cast %4 : vector<2x1x1x256xf32> to vector<2x256xf32>
    %cst = arith.constant 2.990000e-01 : f32
    %6 = vector.broadcast %cst : f32 to vector<2x256xf32>
    %7 = arith.mulf %6, %1 : vector<2x256xf32>
    %cst_9 = arith.constant 5.870000e-01 : f32
    %8 = vector.broadcast %cst_9 : f32 to vector<2x256xf32>
    %9 = arith.mulf %8, %3 : vector<2x256xf32>
    %10 = arith.addf %7, %9 : vector<2x256xf32>
    %cst_10 = arith.constant 1.140000e-01 : f32
    %11 = vector.broadcast %cst_10 : f32 to vector<2x256xf32>
    %12 = arith.mulf %11, %5 : vector<2x256xf32>
    %13 = arith.addf %10, %12 : vector<2x256xf32>
    %c0_11 = arith.constant 0 : index
    %c0_12 = arith.constant 0 : index
    %14 = vector.load %arg2[%c0_11, %c0_12] : memref<256x256xf32, #tpu.memory_space<vmem>>, vector<256x256xf32>
    %c0_13 = arith.constant 0 : index
    %c0_14 = arith.constant 0 : index
    %15 = vector.load %arg3[%c0_13, %c0_14] : memref<256x256xf32, #tpu.memory_space<vmem>>, vector<256x256xf32>
    %cst_15 = arith.constant dense<0.000000e+00> : vector<2x256xf32>
    %16 = tpu.matmul %13, %14, %cst_15 {dimension_numbers = #tpu.dot_dimension_numbers<[1], [0], [0], [1], [0, 0, 1, 1], [], []>} : vector<2x256xf32>, vector<256x256xf32>, vector<2x256xf32> -> vector<2x256xf32>
    %c0_16 = arith.constant 0 : index
    %c0_17 = arith.constant 0 : index
    %17 = vector.load %arg4[%c0_16, %c0_17] : memref<3x256xf32, #tpu.memory_space<vmem>>, vector<1x256xf32>
    %18 = vector.broadcast %17 : vector<1x256xf32> to vector<2x256xf32>
    %19 = arith.mulf %16, %18 : vector<2x256xf32>
    %cst_18 = arith.constant dense<0.000000e+00> : vector<2x256xf32>
    %20 = tpu.matmul %19, %15, %cst_18 {dimension_numbers = #tpu.dot_dimension_numbers<[1], [0], [0], [1], [0, 0, 1, 1], [], []>} : vector<2x256xf32>, vector<256x256xf32>, vector<2x256xf32> -> vector<2x256xf32>
    %c0_19 = arith.constant 0 : index
    %c0_20 = arith.constant 0 : index
    %c0_21 = arith.constant 0 : index
    %21 = vector.load %arg5[%c0_19, %c0_20, %c0_21] : memref<2x3x256xf32, #tpu.memory_space<vmem>>, vector<2x1x256xf32>
    %22 = vector.shape_cast %21 : vector<2x1x256xf32> to vector<2x256xf32>
    %23 = vector.shape_cast %20 : vector<2x256xf32> to vector<2x1x256xf32>
    tpu.vector_store %arg5[%c0_19, %c0_20, %c0_21], %23 {strides = array<i32>} : memref<2x3x256xf32, #tpu.memory_space<vmem>>, vector<2x1x256xf32>,
    %c1_22 = arith.constant 1 : index
    %c0_23 = arith.constant 0 : index
    %24 = vector.load %arg4[%c1_22, %c0_23] : memref<3x256xf32, #tpu.memory_space<vmem>>, vector<1x256xf32>
    %25 = vector.broadcast %24 : vector<1x256xf32> to vector<2x256xf32>
    %26 = arith.mulf %16, %25 : vector<2x256xf32>
    %cst_24 = arith.constant dense<0.000000e+00> : vector<2x256xf32>
    %27 = tpu.matmul %26, %15, %cst_24 {dimension_numbers = #tpu.dot_dimension_numbers<[1], [0], [0], [1], [0, 0, 1, 1], [], []>} : vector<2x256xf32>, vector<256x256xf32>, vector<2x256xf32> -> vector<2x256xf32>
    %c0_25 = arith.constant 0 : index
    %c1_26 = arith.constant 1 : index
    %c0_27 = arith.constant 0 : index
    %28 = vector.load %arg5[%c0_25, %c1_26, %c0_27] : memref<2x3x256xf32, #tpu.memory_space<vmem>>, vector<2x1x256xf32>
    %29 = vector.shape_cast %28 : vector<2x1x256xf32> to vector<2x256xf32>
    %30 = vector.shape_cast %27 : vector<2x256xf32> to vector<2x1x256xf32>
    tpu.vector_store %arg5[%c0_25, %c1_26, %c0_27], %30 {strides = array<i32>} : memref<2x3x256xf32, #tpu.memory_space<vmem>>, vector<2x1x256xf32>,
    %c2_28 = arith.constant 2 : index
    %c0_29 = arith.constant 0 : index
    %31 = vector.load %arg4[%c2_28, %c0_29] : memref<3x256xf32, #tpu.memory_space<vmem>>, vector<1x256xf32>
    %32 = vector.broadcast %31 : vector<1x256xf32> to vector<2x256xf32>
    %33 = arith.mulf %16, %32 : vector<2x256xf32>
    %cst_30 = arith.constant dense<0.000000e+00> : vector<2x256xf32>
    %34 = tpu.matmul %33, %15, %cst_30 {dimension_numbers = #tpu.dot_dimension_numbers<[1], [0], [0], [1], [0, 0, 1, 1], [], []>} : vector<2x256xf32>, vector<256x256xf32>, vector<2x256xf32> -> vector<2x256xf32>
    %c0_31 = arith.constant 0 : index
    %c2_32 = arith.constant 2 : index
    %c0_33 = arith.constant 0 : index
    %35 = vector.load %arg5[%c0_31, %c2_32, %c0_33] : memref<2x3x256xf32, #tpu.memory_space<vmem>>, vector<2x1x256xf32>
    %36 = vector.shape_cast %35 : vector<2x1x256xf32> to vector<2x256xf32>
    %37 = vector.shape_cast %34 : vector<2x256xf32> to vector<2x1x256xf32>
    tpu.vector_store %arg5[%c0_31, %c2_32, %c0_33], %37 {strides = array<i32>} : memref<2x3x256xf32, #tpu.memory_space<vmem>>, vector<2x1x256xf32>,
    return
  }
  func.func @transform_0(%arg0: i32) -> (i32, i32, i32, i32) {
    %c0_i32 = arith.constant 0 : i32
    %c0_i32_0 = arith.constant 0 : i32
    %c0_i32_1 = arith.constant 0 : i32
    %c0_i32_2 = arith.constant 0 : i32
    return %arg0, %c0_i32, %c0_i32_0, %c0_i32_1 : i32, i32, i32, i32
  }
  func.func @transform_1(%arg0: i32) -> (i32, i32) {
    %c0_i32 = arith.constant 0 : i32
    %c0_i32_0 = arith.constant 0 : i32
    %c0_i32_1 = arith.constant 0 : i32
    return %c0_i32, %c0_i32_0 : i32, i32
  }
  func.func @transform_2(%arg0: i32) -> (i32, i32) {
    %c0_i32 = arith.constant 0 : i32
    %c0_i32_0 = arith.constant 0 : i32
    %c0_i32_1 = arith.constant 0 : i32
    return %c0_i32, %c0_i32_0 : i32, i32
  }
  func.func @transform_3(%arg0: i32) -> (i32, i32) {
    %c0_i32 = arith.constant 0 : i32
    %c0_i32_0 = arith.constant 0 : i32
    %c0_i32_1 = arith.constant 0 : i32
    return %c0_i32, %c0_i32_0 : i32, i32
  }
  func.func @transform_4(%arg0: i32) -> (i32, i32, i32) {
    %c0_i32 = arith.constant 0 : i32
    %c0_i32_0 = arith.constant 0 : i32
    %c0_i32_1 = arith.constant 0 : i32
    return %arg0, %c0_i32, %c0_i32_0 : i32, i32, i32
  }
}

</mosaic_0001>

<llo_original>
// kernel: tpu_custom_call.1
$region0: #{tpu_custom_call.1}
  #allocation0 [shape = 'u32[]', space=smem, size = 0x4, offset = 0x4, fixed_abs, tag = 'smem constant byte address 0x4 - core index']
  #allocation1 [shape = 'u32[144,128]{1,0:T(1,128)}', space=vmem, size = 0x12000, scoped, tag = 'internal scratch']
  #allocation7 [shape = 's32[]', space=sflag, size = 0x4, offset = 0, fixed_abs, tag = 'sflag constant byte address 0x0 - dummy sync flag']
  %s0 = inlined_call_operand.hbm [shape: f32[4,4,1,256], index: 0, kind: input, shape index: {}]
  %s1 = inlined_call_operand.hbm [shape: f32[256,256], index: 1, kind: input, shape index: {}]
  %s2 = inlined_call_operand.hbm [shape: f32[256,256], index: 2, kind: input, shape index: {}]
  %s3 = inlined_call_operand.vmem [shape: f32[3,256], index: 3, kind: input, shape index: {}]
  %s4 = inlined_call_operand.vmem [shape: f32[4,3,256], index: 4, kind: output, shape index: {}]
  %s5 = sld [smem:[#allocation0]]
  $region61: #{tpu_custom_call.1} parent=0
    _
  %s7 = ssub.s32 1, %s5
  %s8 = scalar_select 0, %s7, %s5
  $region1: #{tpu_custom_call.1} parent=0
    #allocation2 [shape = 'u8[12288]{0}', space=vmem, size = 0x3000, scoped, tag = 'input window, operand 0']
    #allocation3 [shape = 's32[2]{0}', space=sflag, size = 0x8, scoped, tag = 'scoped memory for tpu_custom_call.1']
    #allocation4 [shape = 'u8[262144]{0}', space=vmem, size = 0x40000, scoped, tag = 'input window, operand 1, single buffered']
    #allocation5 [shape = 's32[1]{0}', space=sflag, size = 0x4, scoped, tag = 'scoped memory for tpu_custom_call.1']
    #allocation6 [shape = 'u8[262144]{0}', space=vmem, size = 0x40000, scoped, tag = 'input window, operand 2, single buffered']
    %9 = vsyncpa [#allocation3], 0
    %s10 = scalar_lea.sflag [#allocation3], 1
    %11 = vsyncpa %s10, 0
    %12 = vsyncpa [#allocation5], 0
    loop: start=0, step=1, limit=4
    $region2: #{tpu_custom_call.1} parent=1 // loop_pre_header
      _
    $region3: #{tpu_custom_call.1} parent=1 // loop_header
      %s14 = sphi 0, %s18
      %p15 = scmp.ge.s32.totalorder %s14, 4
      %s24 = sphi 0, %s26
      %s27 = sphi 0, %s24
      %s28 = sphi 0, %s27
      %s44 = sphi 0, %s28
      %s48 = sphi 0, %s48
      %s50 = sphi 0, %s48
      %s51 = sphi 0, %s50
      %s65 = sphi 0, %s51
      %s69 = sphi 0, %s69
      %s71 = sphi 0, %s69
      %s72 = sphi 0, %s71
      %s86 = sphi 0, %s72
      %s90 = sphi 0, %s90
      %s92 = sphi 0, %s90
      %s93 = sphi 0, %s92
      %s107 = sphi 0, %s93
      %s113 = sphi 0, %s115
      %s116 = sphi 0, %s113
      %s117 = sphi 0, %s116
      %s133 = sphi 0, %s117
    $region4: #{tpu_custom_call.1} parent=1 // loop_header_branch
      %17 = sbr.rel (%p15) target = $region8
    $region5: #{tpu_custom_call.1} parent=1 // loop_body
      %s19 = ssub.s32 %s14, 1
      %s20 = ssub.s32 %s14, 2
      %s21 = sadd.s32 %s14, 1
      %s22 = ssub.s32 %s14, %s21
      %p23 = scmp.eq.s32.totalorder %s22, 0
      %s25 = sadd.s32 %s24, 1
      %s26 = scalar_select %p23, %s24, %s25
      %p29 = pneg %p23
      %p30 = scmp.eq.s32.totalorder %s14, 1
      %p31 = por %p29, %p30
      %p32 = scmp.ne.s32.totalorder %s24, %s27
      %p33 = scmp.eq.s32.totalorder %s14, 0
      %p34 = por %p32, %p33
      %p35 = scmp.ne.s32.totalorder %s24, %s27
      %p36 = scmp.eq.s32.totalorder %s19, 1
      %p37 = por %p35, %p36
      %p38 = scmp.ne.s32.totalorder %s27, %s28
      %p39 = scmp.eq.s32.totalorder %s19, 0
      %p40 = por %p38, %p39
      %p41 = scmp.ne.s32.totalorder %s27, %s28
      %p42 = scmp.eq.s32.totalorder %s20, 1
      %p43 = por %p41, %p42
      %p45 = scmp.ne.s32.totalorder %s28, %s44
      %p46 = scmp.eq.s32.totalorder %s20, 0
      %p47 = por %p45, %p46
      %s49 = sadd.s32 %s48, 1
      %p52 = scmp.eq.s32.totalorder %s14, 1
      %p53 = scmp.ne.s32.totalorder %s48, %s50
      %p54 = scmp.eq.s32.totalorder %s14, 0
      %p55 = por %p53, %p54
      %p56 = scmp.ne.s32.totalorder %s48, %s50
      %p57 = scmp.eq.s32.totalorder %s19, 1
      %p58 = por %p56, %p57
      %p59 = scmp.ne.s32.totalorder %s50, %s51
      %p60 = scmp.eq.s32.totalorder %s19, 0
      %p61 = por %p59, %p60
      %p62 = scmp.ne.s32.totalorder %s50, %s51
      %p63 = scmp.eq.s32.totalorder %s20, 1
      %p64 = por %p62, %p63
      %p66 = scmp.ne.s32.totalorder %s51, %s65
      %p67 = scmp.eq.s32.totalorder %s20, 0
      %p68 = por %p66, %p67
      %s70 = sadd.s32 %s69, 1
      %p73 = scmp.eq.s32.totalorder %s14, 1
      %p74 = scmp.ne.s32.totalorder %s69, %s71
      %p75 = scmp.eq.s32.totalorder %s14, 0
      %p76 = por %p74, %p75
      %p77 = scmp.ne.s32.totalorder %s69, %s71
      %p78 = scmp.eq.s32.totalorder %s19, 1
      %p79 = por %p77, %p78
      %p80 = scmp.ne.s32.totalorder %s71, %s72
      %p81 = scmp.eq.s32.totalorder %s19, 0
      %p82 = por %p80, %p81
      %p83 = scmp.ne.s32.totalorder %s71, %s72
      %p84 = scmp.eq.s32.totalorder %s20, 1
      %p85 = por %p83, %p84
      %p87 = scmp.ne.s32.totalorder %s72, %s86
      %p88 = scmp.eq.s32.totalorder %s20, 0
      %p89 = por %p87, %p88
      %s91 = sadd.s32 %s90, 1
      %p94 = scmp.eq.s32.totalorder %s14, 1
      %p95 = scmp.ne.s32.totalorder %s90, %s92
      %p96 = scmp.eq.s32.totalorder %s14, 0
      %p97 = por %p95, %p96
      %p98 = scmp.ne.s32.totalorder %s90, %s92
      %p99 = scmp.eq.s32.totalorder %s19, 1
      %p100 = por %p98, %p99
      %p101 = scmp.ne.s32.totalorder %s92, %s93
      %p102 = scmp.eq.s32.totalorder %s19, 0
      %p103 = por %p101, %p102
      %p104 = scmp.ne.s32.totalorder %s92, %s93
      %p105 = scmp.eq.s32.totalorder %s20, 1
      %p106 = por %p104, %p105
      %p108 = scmp.ne.s32.totalorder %s93, %s107
      %p109 = scmp.eq.s32.totalorder %s20, 0
      %p110 = por %p108, %p109
      %s111 = ssub.s32 %s14, %s21
      %p112 = scmp.eq.s32.totalorder %s111, 0
      %s114 = sadd.s32 %s113, 1
      %s115 = scalar_select %p112, %s113, %s114
      %p118 = pneg %p112
      %p119 = scmp.eq.s32.totalorder %s14, 1
      %p120 = por %p118, %p119
      %p121 = scmp.ne.s32.totalorder %s113, %s116
      %p122 = scmp.eq.s32.totalorder %s14, 0
      %p123 = por %p121, %p122
      %p124 = scmp.ne.s32.totalorder %s113, %s116
      %p125 = scmp.eq.s32.totalorder %s19, 1
      %p126 = por %p124, %p125
      %p127 = scmp.ne.s32.totalorder %s116, %s117
      %p128 = scmp.eq.s32.totalorder %s19, 0
      %p129 = por %p127, %p128
      %p130 = scmp.ne.s32.totalorder %s116, %s117
      %p131 = scmp.eq.s32.totalorder %s20, 1
      %p132 = por %p130, %p131
      %p134 = scmp.ne.s32.totalorder %s117, %s133
      %p135 = scmp.eq.s32.totalorder %s20, 0
      %p136 = por %p134, %p135
      %p137 = scmp.le.s32.totalorder 1, %s14
      %p138 = scmp.lt.s32.totalorder %s14, 3
      %p139 = pnand %p137, %p138
      %p140 = pneg %p139
      // Predicated region
      $region9: #{tpu_custom_call.1} parent=5 // pred_check
        _
      $region10: #{tpu_custom_call.1} parent=5 // pred_check_branch
        %142 = sbr.rel (%p139) target = $region12
      $region11: #{tpu_custom_call.1} parent=5 // pred_region
        %s143 = ssub.s32 %s14, 1
        // Predicated region
        $region13: #{tpu_custom_call.1} parent=11 // pred_check
          %p144 = pneg %p61
        $region14: #{tpu_custom_call.1} parent=11 // pred_check_branch
          %146 = sbr.rel (%p144) target = $region16
        $region15: #{tpu_custom_call.1} parent=11 // pred_region
          %s148 = ssub.s32 8192, 8192
          %149 = vsyncadd [#allocation5], %s148
          %s150 = sshll.u32 [#allocation4], 4
          %s151 = int_to_ptr.vmem [resolvable:$true] %s150
          %156 = dma.hbm_to_vmem [thread:$0]  %s1, 8192, %s151, [#allocation5], 256, 256, 16
        $region16: #{tpu_custom_call.1} parent=11 // pred_fallthru
          _
        // Predicated region
        $region17: #{tpu_custom_call.1} parent=11 // pred_check
          %p157 = pneg %p82
        $region18: #{tpu_custom_call.1} parent=11 // pred_check_branch
          %159 = sbr.rel (%p157) target = $region20
        $region19: #{tpu_custom_call.1} parent=11 // pred_region
          %s161 = ssub.s32 8192, 8192
          %162 = vsyncadd [#allocation5], %s161
          %s163 = sshll.u32 [#allocation6], 4
          %s164 = int_to_ptr.vmem [resolvable:$true] %s163
          %169 = dma.hbm_to_vmem [thread:$0]  %s2, 8192, %s164, [#allocation5], 256, 256, 16
        $region20: #{tpu_custom_call.1} parent=11 // pred_fallthru
          _
        // Predicated region
        $region21: #{tpu_custom_call.1} parent=11 // pred_check
          %p170 = pneg %p103
        $region22: #{tpu_custom_call.1} parent=11 // pred_check_branch
          %172 = sbr.rel (%p170) target = $region24
        $region23: #{tpu_custom_call.1} parent=11 // pred_region
          _
        $region24: #{tpu_custom_call.1} parent=11 // pred_fallthru
          _
      $region12: #{tpu_custom_call.1} parent=5 // pred_fallthru
        _
      %p173 = scmp.lt.s32.totalorder %s14, 2
      // Predicated region
      $region25: #{tpu_custom_call.1} parent=5 // pred_check
        %p174 = pneg %p173
      $region26: #{tpu_custom_call.1} parent=5 // pred_check_branch
        %176 = sbr.rel (%p174) target = $region28
      $region27: #{tpu_custom_call.1} parent=5 // pred_region
        // Predicated region
        $region29: #{tpu_custom_call.1} parent=27 // pred_check
          %p177 = pneg %p34
        $region30: #{tpu_custom_call.1} parent=27 // pred_check_branch
          %179 = sbr.rel (%p177) target = $region32
        $region31: #{tpu_custom_call.1} parent=27 // pred_region
          #allocation8 [shape = 'u32[6]{0}', space=smem, size = 0x18, scoped, tag = 'DMA stride descriptor']
          %s180 = sand.u32 %s24, 1
          %s181 = scalar_lea.sflag [#allocation3], %s180
          %s182 = sand.u32 %s24, 1
          %s183 = smul.addr %s182, 12
          %s184 = scalar_lea.vmem [#allocation2], %s183
          %s185 = smul.u32 2, %s14
          %s187 = ssub.s32 192, 192
          %188 = vsyncadd %s181, %s187
          %s189 = smul.addr %s185, 8
          %s190 = smul.addr %s189, 16
          %s191 = scalar_lea.hbm %s0, %s190
          %s193 = sshll.u32 1, 14
          %s194 = sxor.u32 4294967295, %s193
          %s196 = sld [smem:[#allocation0]]
          %s197 = sadd.s32 2, %s196
          %s199 = sshll.u32 7, 26
          %s200 = sxor.u32 4294967295, %s199
          %s201 = sand.u32 0, %s200
          %s202 = sshll.u32 %s197, 26
          %s203 = sor.u32 %s201, %s202
          %s204 = sshll.u32 %s184, 4
          %s205 = int_to_ptr.vmem [resolvable:$true] %s204
          %211 = sst [smem:[#allocation8]] 128
          %s212 = scalar_lea.smem [#allocation8], 1
          %213 = sst [smem:[%s212]] 96
          %s214 = scalar_lea.smem [#allocation8], 2
          %215 = sst [smem:[%s214]] 3
          %s216 = scalar_lea.smem [#allocation8], 3
          %217 = sst [smem:[%s216]] 32
          %s218 = scalar_lea.smem [#allocation8], 4
          %219 = sst [smem:[%s218]] 32
          %s220 = scalar_lea.smem [#allocation8], 5
          %221 = sst [smem:[%s220]] 2
          %223 = dma.general %s191, 192, %s205, %s181, [#allocation7], [#allocation8], %s203, 0
        $region32: #{tpu_custom_call.1} parent=27 // pred_fallthru
          _
      $region28: #{tpu_custom_call.1} parent=5 // pred_fallthru
        _
      %p224 = scmp.le.s32.totalorder 1, %s14
      %p225 = scmp.lt.s32.totalorder %s14, 3
      %p226 = pnand %p224, %p225
      %p227 = pneg %p226
      // Predicated region
      $region33: #{tpu_custom_call.1} parent=5 // pred_check
        _
      $region34: #{tpu_custom_call.1} parent=5 // pred_check_branch
        %229 = sbr.rel (%p226) target = $region36
      $region35: #{tpu_custom_call.1} parent=5 // pred_region
        %s230 = ssub.s32 %s14, 1
        %s231 = sand.u32 %s27, 1
        %s232 = scalar_lea.sflag [#allocation3], %s231
        %s233 = sand.u32 %s27, 1
        %s234 = smul.addr %s233, 12
        %s235 = scalar_lea.vmem [#allocation2], %s234
        // Predicated region
        $region37: #{tpu_custom_call.1} parent=35 // pred_check
          %p236 = pneg %p40
        $region38: #{tpu_custom_call.1} parent=35 // pred_check_branch
          %238 = sbr.rel (%p236) target = $region40
        $region39: #{tpu_custom_call.1} parent=35 // pred_region
          %239 = dma.done %s232, 192
        $region40: #{tpu_custom_call.1} parent=35 // pred_fallthru
          _
        // Predicated region
        $region41: #{tpu_custom_call.1} parent=35 // pred_check
          %p240 = pneg %p61
        $region42: #{tpu_custom_call.1} parent=35 // pred_check_branch
          %242 = sbr.rel (%p240) target = $region44
        $region43: #{tpu_custom_call.1} parent=35 // pred_region
          %243 = dma.done [#allocation5], 8192
        $region44: #{tpu_custom_call.1} parent=35 // pred_fallthru
          _
        // Predicated region
        $region45: #{tpu_custom_call.1} parent=35 // pred_check
          %p244 = pneg %p82
        $region46: #{tpu_custom_call.1} parent=35 // pred_check_branch
          %246 = sbr.rel (%p244) target = $region48
        $region47: #{tpu_custom_call.1} parent=35 // pred_region
          %247 = dma.done [#allocation5], 8192
        $region48: #{tpu_custom_call.1} parent=35 // pred_fallthru
          _
        %s248 = sand.u32 %s27, 1
        %s249 = scalar_lea.sflag [#allocation3], %s248
        %s250 = sand.u32 %s27, 1
        %s251 = smul.addr %s250, 12
        %s252 = scalar_lea.vmem [#allocation2], %s251
        %p253 = pneg %p40
        %p254 = pneg %p37
        %p255 = pneg %p61
        %p256 = pneg %p58
        %p257 = pneg %p82
        %p258 = pneg %p79
        %p259 = pneg %p103
        %p260 = pneg %p100
        %p261 = pneg %p129
        %p262 = pneg %p126
        %s263 = smul.u32 2, %s19
        %p264 = scmp.lt.s32.totalorder %s263, 3
        %s265 = scalar_select %p264, %s263, 3
        %s266 = smul.addr %s265, 2
        %s267 = smul.addr %s266, 4
        %s268 = scalar_lea.vmem %s4, %s267
        %s269 = smul.u32 2, %s19
        %s270 = smul.u32 2, %s19
        %p271 = scmp.lt.s32.totalorder %s270, 3
        %s272 = scalar_select %p271, %s270, 3
        %s273 = smul.addr %s272, 2
        %s274 = smul.addr %s273, 4
        %s275 = scalar_lea.vmem %s4, %s274
        %s276 = smul.u32 2, %s19
        %v277 = vld [vmem:[%s235] sm:$0x3]
        %v278 = vld [vmem:[%s235 + $0x6] sm:$0x3]
        %s279 = scalar_lea.vmem %s235, 2 [#allocation2]
        %v280 = vld [vmem:[%s279] sm:$0x3]
        %v281 = vld [vmem:[%s279 + $0x6] sm:$0x3]
        %s282 = scalar_lea.vmem %s235, 4 [#allocation2]
        %v283 = vld [vmem:[%s282] sm:$0x3]
        %v284 = vld [vmem:[%s282 + $0x6] sm:$0x3]
        %v285 = vmul.f32 %v277, 0.299
        %v286 = vmul.f32 %v278, 0.299
        %v287 = vmul.f32 %v280, 0.587
        %v288 = vmul.f32 %v281, 0.587
        %v289 = vadd.f32 %v285, %v287
        %v290 = vadd.f32 %v286, %v288
        %v291 = vmul.f32 %v283, 0.114
        %v292 = vmul.f32 %v284, 0.114
        %v293 = vadd.f32 %v289, %v291
        %v294 = vadd.f32 %v290, %v292
        %v295 = vld [vmem:[#allocation4] sm:$0xff]
        %v296 = vld [vmem:[#allocation4 + $0x8] sm:$0xff]
        %v297 = vld [vmem:[#allocation4 + $0x10] sm:$0xff]
        %v298 = vld [vmem:[#allocation4 + $0x18] sm:$0xff]
        %v299 = vld [vmem:[#allocation4 + $0x20] sm:$0xff]
        %v300 = vld [vmem:[#allocation4 + $0x28] sm:$0xff]
        %v301 = vld [vmem:[#allocation4 + $0x30] sm:$0xff]
        %v302 = vld [vmem:[#allocation4 + $0x38] sm:$0xff]
        %v303 = vld [vmem:[#allocation4 + $0x40] sm:$0xff]
        %v304 = vld [vmem:[#allocation4 + $0x48] sm:$0xff]
        %v305 = vld [vmem:[#allocation4 + $0x50] sm:$0xff]
        %v306 = vld [vmem:[#allocation4 + $0x58] sm:$0xff]
        %v307 = vld [vmem:[#allocation4 + $0x60] sm:$0xff]
        %v308 = vld [vmem:[#allocation4 + $0x68] sm:$0xff]
        %v309 = vld [vmem:[#allocation4 + $0x70] sm:$0xff]
        %v310 = vld [vmem:[#allocation4 + $0x78] sm:$0xff]
        %v311 = vld [vmem:[#allocation4 + $0x80] sm:$0xff]
        %v312 = vld [vmem:[#allocation4 + $0x88] sm:$0xff]
        %v313 = vld [vmem:[#allocation4 + $0x90] sm:$0xff]
        %v314 = vld [vmem:[#allocation4 + $0x98] sm:$0xff]
        %v315 = vld [vmem:[#allocation4 + $0xa0] sm:$0xff]
        %v316 = vld [vmem:[#allocation4 + $0xa8] sm:$0xff]
        %v317 = vld [vmem:[#allocation4 + $0xb0] sm:$0xff]
        %v318 = vld [vmem:[#allocation4 + $0xb8] sm:$0xff]
        %v319 = vld [vmem:[#allocation4 + $0xc0] sm:$0xff]
        %v320 = vld [vmem:[#allocation4 + $0xc8] sm:$0xff]
        %v321 = vld [vmem:[#allocation4 + $0xd0] sm:$0xff]
        %v322 = vld [vmem:[#allocation4 + $0xd8] sm:$0xff]
        %v323 = vld [vmem:[#allocation4 + $0xe0] sm:$0xff]
        %v324 = vld [vmem:[#allocation4 + $0xe8] sm:$0xff]
        %v325 = vld [vmem:[#allocation4 + $0xf0] sm:$0xff]
        %v326 = vld [vmem:[#allocation4 + $0xf8] sm:$0xff]
        %v327 = vld [vmem:[#allocation4 + $0x100] sm:$0xff]
        %v328 = vld [vmem:[#allocation4 + $0x108] sm:$0xff]
        %v329 = vld [vmem:[#allocation4 + $0x110] sm:$0xff]
        %v330 = vld [vmem:[#allocation4 + $0x118] sm:$0xff]
        %v331 = vld [vmem:[#allocation4 + $0x120] sm:$0xff]
        %v332 = vld [vmem:[#allocation4 + $0x128] sm:$0xff]
        %v333 = vld [vmem:[#allocation4 + $0x130] sm:$0xff]
        %v334 = vld [vmem:[#allocation4 + $0x138] sm:$0xff]
        %v335 = vld [vmem:[#allocation4 + $0x140] sm:$0xff]
        %v336 = vld [vmem:[#allocation4 + $0x148] sm:$0xff]
        %v337 = vld [vmem:[#allocation4 + $0x150] sm:$0xff]
        %v338 = vld [vmem:[#allocation4 + $0x158] sm:$0xff]
        %v339 = vld [vmem:[#allocation4 + $0x160] sm:$0xff]
        %v340 = vld [vmem:[#allocation4 + $0x168] sm:$0xff]
        %v341 = vld [vmem:[#allocation4 + $0x170] sm:$0xff]
        %v342 = vld [vmem:[#allocation4 + $0x178] sm:$0xff]
        %v343 = vld [vmem:[#allocation4 + $0x180] sm:$0xff]
        %v344 = vld [vmem:[#allocation4 + $0x188] sm:$0xff]
        %v345 = vld [vmem:[#allocation4 + $0x190] sm:$0xff]
        %v346 = vld [vmem:[#allocation4 + $0x198] sm:$0xff]
        %v347 = vld [vmem:[#allocation4 + $0x1a0] sm:$0xff]
        %v348 = vld [vmem:[#allocation4 + $0x1a8] sm:$0xff]
        %v349 = vld [vmem:[#allocation4 + $0x1b0] sm:$0xff]
        %v350 = vld [vmem:[#allocation4 + $0x1b8] sm:$0xff]
        %v351 = vld [vmem:[#allocation4 + $0x1c0] sm:$0xff]
        %v352 = vld [vmem:[#allocation4 + $0x1c8] sm:$0xff]
        %v353 = vld [vmem:[#allocation4 + $0x1d0] sm:$0xff]
        %v354 = vld [vmem:[#allocation4 + $0x1d8] sm:$0xff]
        %v355 = vld [vmem:[#allocation4 + $0x1e0] sm:$0xff]
        %v356 = vld [vmem:[#allocation4 + $0x1e8] sm:$0xff]
        %v357 = vld [vmem:[#allocation4 + $0x1f0] sm:$0xff]
        %v358 = vld [vmem:[#allocation4 + $0x1f8] sm:$0xff]
        %v359 = vld [vmem:[#allocation6] sm:$0xff]
        %v360 = vld [vmem:[#allocation6 + $0x8] sm:$0xff]
        %v361 = vld [vmem:[#allocation6 + $0x10] sm:$0xff]
        %v362 = vld [vmem:[#allocation6 + $0x18] sm:$0xff]
        %v363 = vld [vmem:[#allocation6 + $0x20] sm:$0xff]
        %v364 = vld [vmem:[#allocation6 + $0x28] sm:$0xff]
        %v365 = vld [vmem:[#allocation6 + $0x30] sm:$0xff]
        %v366 = vld [vmem:[#allocation6 + $0x38] sm:$0xff]
        %v367 = vld [vmem:[#allocation6 + $0x40] sm:$0xff]
        %v368 = vld [vmem:[#allocation6 + $0x48] sm:$0xff]
        %v369 = vld [vmem:[#allocation6 + $0x50] sm:$0xff]
        %v370 = vld [vmem:[#allocation6 + $0x58] sm:$0xff]
        %v371 = vld [vmem:[#allocation6 + $0x60] sm:$0xff]
        %v372 = vld [vmem:[#allocation6 + $0x68] sm:$0xff]
        %v373 = vld [vmem:[#allocation6 + $0x70] sm:$0xff]
        %v374 = vld [vmem:[#allocation6 + $0x78] sm:$0xff]
        %v375 = vld [vmem:[#allocation6 + $0x80] sm:$0xff]
        %v376 = vld [vmem:[#allocation6 + $0x88] sm:$0xff]
        %v377 = vld [vmem:[#allocation6 + $0x90] sm:$0xff]
        %v378 = vld [vmem:[#allocation6 + $0x98] sm:$0xff]
        %v379 = vld [vmem:[#allocation6 + $0xa0] sm:$0xff]
        %v380 = vld [vmem:[#allocation6 + $0xa8] sm:$0xff]
        %v381 = vld [vmem:[#allocation6 + $0xb0] sm:$0xff]
        %v382 = vld [vmem:[#allocation6 + $0xb8] sm:$0xff]
        %v383 = vld [vmem:[#allocation6 + $0xc0] sm:$0xff]
        %v384 = vld [vmem:[#allocation6 + $0xc8] sm:$0xff]
        %v385 = vld [vmem:[#allocation6 + $0xd0] sm:$0xff]
        %v386 = vld [vmem:[#allocation6 + $0xd8] sm:$0xff]
        %v387 = vld [vmem:[#allocation6 + $0xe0] sm:$0xff]
        %v388 = vld [vmem:[#allocation6 + $0xe8] sm:$0xff]
        %v389 = vld [vmem:[#allocation6 + $0xf0] sm:$0xff]
        %v390 = vld [vmem:[#allocation6 + $0xf8] sm:$0xff]
        %v391 = vld [vmem:[#allocation6 + $0x100] sm:$0xff]
        %v392 = vld [vmem:[#allocation6 + $0x108] sm:$0xff]
        %v393 = vld [vmem:[#allocation6 + $0x110] sm:$0xff]
        %v394 = vld [vmem:[#allocation6 + $0x118] sm:$0xff]
        %v395 = vld [vmem:[#allocation6 + $0x120] sm:$0xff]
        %v396 = vld [vmem:[#allocation6 + $0x128] sm:$0xff]
        %v397 = vld [vmem:[#allocation6 + $0x130] sm:$0xff]
        %v398 = vld [vmem:[#allocation6 + $0x138] sm:$0xff]
        %v399 = vld [vmem:[#allocation6 + $0x140] sm:$0xff]
        %v400 = vld [vmem:[#allocation6 + $0x148] sm:$0xff]
        %v401 = vld [vmem:[#allocation6 + $0x150] sm:$0xff]
        %v402 = vld [vmem:[#allocation6 + $0x158] sm:$0xff]
        %v403 = vld [vmem:[#allocation6 + $0x160] sm:$0xff]
        %v404 = vld [vmem:[#allocation6 + $0x168] sm:$0xff]
        %v405 = vld [vmem:[#allocation6 + $0x170] sm:$0xff]
        %v406 = vld [vmem:[#allocation6 + $0x178] sm:$0xff]
        %v407 = vld [vmem:[#allocation6 + $0x180] sm:$0xff]
        %v408 = vld [vmem:[#allocation6 + $0x188] sm:$0xff]
        %v409 = vld [vmem:[#allocation6 + $0x190] sm:$0xff]
        %v410 = vld [vmem:[#allocation6 + $0x198] sm:$0xff]
        %v411 = vld [vmem:[#allocation6 + $0x1a0] sm:$0xff]
        %v412 = vld [vmem:[#allocation6 + $0x1a8] sm:$0xff]
        %v413 = vld [vmem:[#allocation6 + $0x1b0] sm:$0xff]
        %v414 = vld [vmem:[#allocation6 + $0x1b8] sm:$0xff]
        %v415 = vld [vmem:[#allocation6 + $0x1c0] sm:$0xff]
        %v416 = vld [vmem:[#allocation6 + $0x1c8] sm:$0xff]
        %v417 = vld [vmem:[#allocation6 + $0x1d0] sm:$0xff]
        %v418 = vld [vmem:[#allocation6 + $0x1d8] sm:$0xff]
        %v419 = vld [vmem:[#allocation6 + $0x1e0] sm:$0xff]
        %v420 = vld [vmem:[#allocation6 + $0x1e8] sm:$0xff]
        %v421 = vld [vmem:[#allocation6 + $0x1f0] sm:$0xff]
        %v422 = vld [vmem:[#allocation6 + $0x1f8] sm:$0xff]
        %v425 = vcombine.low %v293, %v294
        %v427 = vunpack.c.l.s4 1966171168
        %v428 = vunpack.c.0.s8 %v427
        %v429 = vlaneseq
        %v430 = vshrl.u32 %v429, 7
        %v431 = vsub.s32 %v428, %v430
        %v432 = vrot.slane %v425, %v431
        %v433 = vcombine.high %v432, %v432
        %v435 = vunpack.c.l.s4 1966171168
        %v436 = vunpack.c.0.s8 %v435
        %v437 = vlaneseq
        %v438 = vshrl.u32 %v437, 7
        %v439 = vsub.s32 %v436, %v438
        %v440 = vrot.slane %v432, %v439
        %v442 = vunpack.c.l.s4 1966171168
        %v443 = vunpack.c.0.s8 %v442
        %v444 = vlaneseq
        %v445 = vshrl.u32 %v444, 7
        %v446 = vsub.s32 %v443, %v445
        %v447 = vrot.slane %v433, %v446
        %450 = vmatprep.subr.mxu0 %v296
        %451 = vmatpush1.msra.mxu0 %v295
        %452 = vmatprep.subr.mxu0 %v298
        %453 = vmatpush1.msra.mxu0 %v297
        %454 = vmatprep.subr.mxu0 %v300
        %455 = vmatpush1.msra.mxu0 %v299
        %456 = vmatprep.subr.mxu0 %v302
        %457 = vmatpush1.msra.mxu0 %v301
        %458 = vmatprep.subr.mxu0 %v304
        %459 = vmatpush1.msra.mxu0 %v303
        %460 = vmatprep.subr.mxu0 %v306
        %461 = vmatpush1.msra.mxu0 %v305
        %462 = vmatprep.subr.mxu0 %v308
        %463 = vmatpush1.msra.mxu0 %v307
        %464 = vmatprep.subr.mxu0 %v310
        %465 = vmatpush1.msra.mxu0 %v309
        %466 = vmatprep.subr.mxu0 %v312
        %467 = vmatpush1.msra.mxu0 %v311
        %468 = vmatprep.subr.mxu0 %v314
        %469 = vmatpush1.msra.mxu0 %v313
        %470 = vmatprep.subr.mxu0 %v316
        %471 = vmatpush1.msra.mxu0 %v315
        %472 = vmatprep.subr.mxu0 %v318
        %473 = vmatpush1.msra.mxu0 %v317
        %474 = vmatprep.subr.mxu0 %v320
        %475 = vmatpush1.msra.mxu0 %v319
        %476 = vmatprep.subr.mxu0 %v322
        %477 = vmatpush1.msra.mxu0 %v321
        %478 = vmatprep.subr.mxu0 %v324
        %479 = vmatpush1.msra.mxu0 %v323
        %480 = vmatprep.subr.mxu0 %v326
        %481 = vmatpush1.msra.mxu0 %v325
        %482 = vmatprep.subr.mxu0 %v328
        %483 = vmatpush1.msra.mxu0 %v327
        %484 = vmatprep.subr.mxu0 %v330
        %485 = vmatpush1.msra.mxu0 %v329
        %486 = vmatprep.subr.mxu0 %v332
        %487 = vmatpush1.msra.mxu0 %v331
        %488 = vmatprep.subr.mxu0 %v334
        %489 = vmatpush1.msra.mxu0 %v333
        %490 = vmatprep.subr.mxu0 %v336
        %491 = vmatpush1.msra.mxu0 %v335
        %492 = vmatprep.subr.mxu0 %v338
        %493 = vmatpush1.msra.mxu0 %v337
        %494 = vmatprep.subr.mxu0 %v340
        %495 = vmatpush1.msra.mxu0 %v339
        %496 = vmatprep.subr.mxu0 %v342
        %497 = vmatpush1.msra.mxu0 %v341
        %498 = vmatprep.subr.mxu0 %v344
        %499 = vmatpush1.msra.mxu0 %v343
        %500 = vmatprep.subr.mxu0 %v346
        %501 = vmatpush1.msra.mxu0 %v345
        %502 = vmatprep.subr.mxu0 %v348
        %503 = vmatpush1.msra.mxu0 %v347
        %504 = vmatprep.subr.mxu0 %v350
        %505 = vmatpush1.msra.mxu0 %v349
        %506 = vmatprep.subr.mxu0 %v352
        %507 = vmatpush1.msra.mxu0 %v351
        %508 = vmatprep.subr.mxu0 %v354
        %509 = vmatpush1.msra.mxu0 %v353
        %510 = vmatprep.subr.mxu0 %v356
        %511 = vmatpush1.msra.mxu0 %v355
        %512 = vmatprep.subr.mxu0 %v358
        %513 = vmatpush1.msra.mxu0 %v357
        %514 = vmatprep.mubr.f32.mxu0 %v447
        %515 = vmatmul.mubr.f32.gmra.mrb[0].mxu0 %v440
        %v516 = vpop.f32.mrb[0].mxu0
        %v517 = vadd.f32 0.0, %v516
        %v518 = vpop.f32.mrb[0].mxu0
        %v519 = vadd.f32 0.0, %v518
        %520 = vdwg.mxu0
        %v521 = vld [vmem:[%s3] ss:$4 sm:$0x3]
        %v523 = vlaneseq
        %v524 = vshrl.u32 %v523, 7
        %v525 = vsub.s32 0, %v524
        %v526 = vrot.slane %v521, %v525
        %v527 = vlaneseq
        %v528 = vshrl.u32 %v527, 7
        %v529 = vsub.s32 1, %v528
        %v530 = vrot.slane %v521, %v529
        %v533 = vmul.f32 %v517, %v526
        %v534 = vmul.f32 %v519, %v530
        %535 = vmatprep.subr.mxu0 %v360
        %536 = vmatpush1.msra.mxu0 %v359
        %537 = vmatprep.subr.mxu0 %v362
        %538 = vmatpush1.msra.mxu0 %v361
        %539 = vmatprep.subr.mxu0 %v364
        %540 = vmatpush1.msra.mxu0 %v363
        %541 = vmatprep.subr.mxu0 %v366
        %542 = vmatpush1.msra.mxu0 %v365
        %543 = vmatprep.subr.mxu0 %v368
        %544 = vmatpush1.msra.mxu0 %v367
        %545 = vmatprep.subr.mxu0 %v370
        %546 = vmatpush1.msra.mxu0 %v369
        %547 = vmatprep.subr.mxu0 %v372
        %548 = vmatpush1.msra.mxu0 %v371
        %549 = vmatprep.subr.mxu0 %v374
        %550 = vmatpush1.msra.mxu0 %v373
        %551 = vmatprep.subr.mxu0 %v376
        %552 = vmatpush1.msra.mxu0 %v375
        %553 = vmatprep.subr.mxu0 %v378
        %554 = vmatpush1.msra.mxu0 %v377
        %555 = vmatprep.subr.mxu0 %v380
        %556 = vmatpush1.msra.mxu0 %v379
        %557 = vmatprep.subr.mxu0 %v382
        %558 = vmatpush1.msra.mxu0 %v381
        %559 = vmatprep.subr.mxu0 %v384
        %560 = vmatpush1.msra.mxu0 %v383
        %561 = vmatprep.subr.mxu0 %v386
        %562 = vmatpush1.msra.mxu0 %v385
        %563 = vmatprep.subr.mxu0 %v388
        %564 = vmatpush1.msra.mxu0 %v387
        %565 = vmatprep.subr.mxu0 %v390
        %566 = vmatpush1.msra.mxu0 %v389
        %567 = vmatprep.subr.mxu0 %v392
        %568 = vmatpush1.msra.mxu0 %v391
        %569 = vmatprep.subr.mxu0 %v394
        %570 = vmatpush1.msra.mxu0 %v393
        %571 = vmatprep.subr.mxu0 %v396
        %572 = vmatpush1.msra.mxu0 %v395
        %573 = vmatprep.subr.mxu0 %v398
        %574 = vmatpush1.msra.mxu0 %v397
        %575 = vmatprep.subr.mxu0 %v400
        %576 = vmatpush1.msra.mxu0 %v399
        %577 = vmatprep.subr.mxu0 %v402
        %578 = vmatpush1.msra.mxu0 %v401
        %579 = vmatprep.subr.mxu0 %v404
        %580 = vmatpush1.msra.mxu0 %v403
        %581 = vmatprep.subr.mxu0 %v406
        %582 = vmatpush1.msra.mxu0 %v405
        %583 = vmatprep.subr.mxu0 %v408
        %584 = vmatpush1.msra.mxu0 %v407
        %585 = vmatprep.subr.mxu0 %v410
        %586 = vmatpush1.msra.mxu0 %v409
        %587 = vmatprep.subr.mxu0 %v412
        %588 = vmatpush1.msra.mxu0 %v411
        %589 = vmatprep.subr.mxu0 %v414
        %590 = vmatpush1.msra.mxu0 %v413
        %591 = vmatprep.subr.mxu0 %v416
        %592 = vmatpush1.msra.mxu0 %v415
        %593 = vmatprep.subr.mxu0 %v418
        %594 = vmatpush1.msra.mxu0 %v417
        %595 = vmatprep.subr.mxu0 %v420
        %596 = vmatpush1.msra.mxu0 %v419
        %597 = vmatprep.subr.mxu0 %v422
        %598 = vmatpush1.msra.mxu0 %v421
        %599 = vmatprep.mubr.f32.mxu0 %v534
        %600 = vmatmul.mubr.f32.gmra.mrb[0].mxu0 %v533
        %v601 = vpop.f32.mrb[0].mxu0
        %v602 = vadd.f32 0.0, %v601
        %v603 = vpop.f32.mrb[0].mxu0
        %v604 = vadd.f32 0.0, %v603
        %605 = vdwg.mxu0
        %v608 = vcombine.low %v602, %v604
        %v610 = vunpack.c.l.s4 1966171168
        %v611 = vunpack.c.0.s8 %v610
        %v612 = vlaneseq
        %v613 = vshrl.u32 %v612, 7
        %v614 = vsub.s32 %v611, %v613
        %v615 = vrot.slane %v608, %v614
        %v616 = vcombine.high %v615, %v615
        %v618 = vunpack.c.l.s4 1966171168
        %v619 = vunpack.c.0.s8 %v618
        %v620 = vlaneseq
        %v621 = vshrl.u32 %v620, 7
        %v622 = vsub.s32 %v619, %v621
        %v623 = vrot.slane %v615, %v622
        %v625 = vunpack.c.l.s4 1966171168
        %v626 = vunpack.c.0.s8 %v625
        %v627 = vlaneseq
        %v628 = vshrl.u32 %v627, 7
        %v629 = vsub.s32 %v626, %v628
        %v630 = vrot.slane %v616, %v629
        %v633 = vlaneseq
        %vm634 = vcmp.ge.s32.totalorder %v633, 0
        %vm635 = vcmp.lt.s32.totalorder %v633, 256
        %vm636 = vmand %vm634, %vm635
        %637 = vst.msk [vmem:[%s275] ss:$4 sm:$0x3] %vm636, %v623
        %s638 = scalar_lea.vmem %s275, 8
        %639 = vst.msk [vmem:[%s638] ss:$4 sm:$0x3] %vm636, %v630
        %s640 = scalar_lea.vmem %s3, 1
        %v641 = vld [vmem:[%s640] ss:$4 sm:$0x3]
        %v643 = vlaneseq
        %v644 = vshrl.u32 %v643, 7
        %v645 = vsub.s32 0, %v644
        %v646 = vrot.slane %v641, %v645
        %v647 = vlaneseq
        %v648 = vshrl.u32 %v647, 7
        %v649 = vsub.s32 1, %v648
        %v650 = vrot.slane %v641, %v649
        %v653 = vmul.f32 %v517, %v646
        %v654 = vmul.f32 %v519, %v650
        %655 = vmatprep.subr.mxu0 %v360
        %656 = vmatpush1.msra.mxu0 %v359
        %657 = vmatprep.subr.mxu0 %v362
        %658 = vmatpush1.msra.mxu0 %v361
        %659 = vmatprep.subr.mxu0 %v364
        %660 = vmatpush1.msra.mxu0 %v363
        %661 = vmatprep.subr.mxu0 %v366
        %662 = vmatpush1.msra.mxu0 %v365
        %663 = vmatprep.subr.mxu0 %v368
        %664 = vmatpush1.msra.mxu0 %v367
        %665 = vmatprep.subr.mxu0 %v370
        %666 = vmatpush1.msra.mxu0 %v369
        %667 = vmatprep.subr.mxu0 %v372
        %668 = vmatpush1.msra.mxu0 %v371
        %669 = vmatprep.subr.mxu0 %v374
        %670 = vmatpush1.msra.mxu0 %v373
        %671 = vmatprep.subr.mxu0 %v376
        %672 = vmatpush1.msra.mxu0 %v375
        %673 = vmatprep.subr.mxu0 %v378
        %674 = vmatpush1.msra.mxu0 %v377
        %675 = vmatprep.subr.mxu0 %v380
        %676 = vmatpush1.msra.mxu0 %v379
        %677 = vmatprep.subr.mxu0 %v382
        %678 = vmatpush1.msra.mxu0 %v381
        %679 = vmatprep.subr.mxu0 %v384
        %680 = vmatpush1.msra.mxu0 %v383
        %681 = vmatprep.subr.mxu0 %v386
        %682 = vmatpush1.msra.mxu0 %v385
        %683 = vmatprep.subr.mxu0 %v388
        %684 = vmatpush1.msra.mxu0 %v387
        %685 = vmatprep.subr.mxu0 %v390
        %686 = vmatpush1.msra.mxu0 %v389
        %687 = vmatprep.subr.mxu0 %v392
        %688 = vmatpush1.msra.mxu0 %v391
        %689 = vmatprep.subr.mxu0 %v394
        %690 = vmatpush1.msra.mxu0 %v393
        %691 = vmatprep.subr.mxu0 %v396
        %692 = vmatpush1.msra.mxu0 %v395
        %693 = vmatprep.subr.mxu0 %v398
        %694 = vmatpush1.msra.mxu0 %v397
        %695 = vmatprep.subr.mxu0 %v400
        %696 = vmatpush1.msra.mxu0 %v399
        %697 = vmatprep.subr.mxu0 %v402
        %698 = vmatpush1.msra.mxu0 %v401
        %699 = vmatprep.subr.mxu0 %v404
        %700 = vmatpush1.msra.mxu0 %v403
        %701 = vmatprep.subr.mxu0 %v406
        %702 = vmatpush1.msra.mxu0 %v405
        %703 = vmatprep.subr.mxu0 %v408
        %704 = vmatpush1.msra.mxu0 %v407
        %705 = vmatprep.subr.mxu0 %v410
        %706 = vmatpush1.msra.mxu0 %v409
        %707 = vmatprep.subr.mxu0 %v412
        %708 = vmatpush1.msra.mxu0 %v411
        %709 = vmatprep.subr.mxu0 %v414
        %710 = vmatpush1.msra.mxu0 %v413
        %711 = vmatprep.subr.mxu0 %v416
        %712 = vmatpush1.msra.mxu0 %v415
        %713 = vmatprep.subr.mxu0 %v418
        %714 = vmatpush1.msra.mxu0 %v417
        %715 = vmatprep.subr.mxu0 %v420
        %716 = vmatpush1.msra.mxu0 %v419
        %717 = vmatprep.subr.mxu0 %v422
        %718 = vmatpush1.msra.mxu0 %v421
        %719 = vmatprep.mubr.f32.mxu0 %v654
        %720 = vmatmul.mubr.f32.gmra.mrb[0].mxu0 %v653
        %v721 = vpop.f32.mrb[0].mxu0
        %v722 = vadd.f32 0.0, %v721
        %v723 = vpop.f32.mrb[0].mxu0
        %v724 = vadd.f32 0.0, %v723
        %725 = vdwg.mxu0
        %v728 = vcombine.low %v722, %v724
        %v730 = vunpack.c.l.s4 1966171168
        %v731 = vunpack.c.0.s8 %v730
        %v732 = vlaneseq
        %v733 = vshrl.u32 %v732, 7
        %v734 = vsub.s32 %v731, %v733
        %v735 = vrot.slane %v728, %v734
        %v736 = vcombine.high %v735, %v735
        %v738 = vunpack.c.l.s4 1966171168
        %v739 = vunpack.c.0.s8 %v738
        %v740 = vlaneseq
        %v741 = vshrl.u32 %v740, 7
        %v742 = vsub.s32 %v739, %v741
        %v743 = vrot.slane %v735, %v742
        %v745 = vunpack.c.l.s4 1966171168
        %v746 = vunpack.c.0.s8 %v745
        %v747 = vlaneseq
        %v748 = vshrl.u32 %v747, 7
        %v749 = vsub.s32 %v746, %v748
        %v750 = vrot.slane %v736, %v749
        %s753 = scalar_lea.vmem %s275, 1
        %754 = vst.msk [vmem:[%s753] ss:$4 sm:$0x3] %vm636, %v743
        %s755 = scalar_lea.vmem %s275, 9
        %756 = vst.msk [vmem:[%s755] ss:$4 sm:$0x3] %vm636, %v750
        %s757 = scalar_lea.vmem %s3, 2
        %v758 = vld [vmem:[%s757] ss:$4 sm:$0x3]
        %v760 = vlaneseq
        %v761 = vshrl.u32 %v760, 7
        %v762 = vsub.s32 0, %v761
        %v763 = vrot.slane %v758, %v762
        %v764 = vlaneseq
        %v765 = vshrl.u32 %v764, 7
        %v766 = vsub.s32 1, %v765
        %v767 = vrot.slane %v758, %v766
        %v770 = vmul.f32 %v517, %v763
        %v771 = vmul.f32 %v519, %v767
        %772 = vmatprep.subr.mxu0 %v360
        %773 = vmatpush1.msra.mxu0 %v359
        %774 = vmatprep.subr.mxu0 %v362
        %775 = vmatpush1.msra.mxu0 %v361
        %776 = vmatprep.subr.mxu0 %v364
        %777 = vmatpush1.msra.mxu0 %v363
        %778 = vmatprep.subr.mxu0 %v366
        %779 = vmatpush1.msra.mxu0 %v365
        %780 = vmatprep.subr.mxu0 %v368
        %781 = vmatpush1.msra.mxu0 %v367
        %782 = vmatprep.subr.mxu0 %v370
        %783 = vmatpush1.msra.mxu0 %v369
        %784 = vmatprep.subr.mxu0 %v372
        %785 = vmatpush1.msra.mxu0 %v371
        %786 = vmatprep.subr.mxu0 %v374
        %787 = vmatpush1.msra.mxu0 %v373
        %788 = vmatprep.subr.mxu0 %v376
        %789 = vmatpush1.msra.mxu0 %v375
        %790 = vmatprep.subr.mxu0 %v378
        %791 = vmatpush1.msra.mxu0 %v377
        %792 = vmatprep.subr.mxu0 %v380
        %793 = vmatpush1.msra.mxu0 %v379
        %794 = vmatprep.subr.mxu0 %v382
        %795 = vmatpush1.msra.mxu0 %v381
        %796 = vmatprep.subr.mxu0 %v384
        %797 = vmatpush1.msra.mxu0 %v383
        %798 = vmatprep.subr.mxu0 %v386
        %799 = vmatpush1.msra.mxu0 %v385
        %800 = vmatprep.subr.mxu0 %v388
        %801 = vmatpush1.msra.mxu0 %v387
        %802 = vmatprep.subr.mxu0 %v390
        %803 = vmatpush1.msra.mxu0 %v389
        %804 = vmatprep.subr.mxu0 %v392
        %805 = vmatpush1.msra.mxu0 %v391
        %806 = vmatprep.subr.mxu0 %v394
        %807 = vmatpush1.msra.mxu0 %v393
        %808 = vmatprep.subr.mxu0 %v396
        %809 = vmatpush1.msra.mxu0 %v395
        %810 = vmatprep.subr.mxu0 %v398
        %811 = vmatpush1.msra.mxu0 %v397
        %812 = vmatprep.subr.mxu0 %v400
        %813 = vmatpush1.msra.mxu0 %v399
        %814 = vmatprep.subr.mxu0 %v402
        %815 = vmatpush1.msra.mxu0 %v401
        %816 = vmatprep.subr.mxu0 %v404
        %817 = vmatpush1.msra.mxu0 %v403
        %818 = vmatprep.subr.mxu0 %v406
        %819 = vmatpush1.msra.mxu0 %v405
        %820 = vmatprep.subr.mxu0 %v408
        %821 = vmatpush1.msra.mxu0 %v407
        %822 = vmatprep.subr.mxu0 %v410
        %823 = vmatpush1.msra.mxu0 %v409
        %824 = vmatprep.subr.mxu0 %v412
        %825 = vmatpush1.msra.mxu0 %v411
        %826 = vmatprep.subr.mxu0 %v414
        %827 = vmatpush1.msra.mxu0 %v413
        %828 = vmatprep.subr.mxu0 %v416
        %829 = vmatpush1.msra.mxu0 %v415
        %830 = vmatprep.subr.mxu0 %v418
        %831 = vmatpush1.msra.mxu0 %v417
        %832 = vmatprep.subr.mxu0 %v420
        %833 = vmatpush1.msra.mxu0 %v419
        %834 = vmatprep.subr.mxu0 %v422
        %835 = vmatpush1.msra.mxu0 %v421
        %836 = vmatprep.mubr.f32.mxu0 %v771
        %837 = vmatmul.mubr.f32.gmra.mrb[0].mxu0 %v770
        %v838 = vpop.f32.mrb[0].mxu0
        %v839 = vadd.f32 0.0, %v838
        %v840 = vpop.f32.mrb[0].mxu0
        %v841 = vadd.f32 0.0, %v840
        %842 = vdwg.mxu0
        %v845 = vcombine.low %v839, %v841
        %v847 = vunpack.c.l.s4 1966171168
        %v848 = vunpack.c.0.s8 %v847
        %v849 = vlaneseq
        %v850 = vshrl.u32 %v849, 7
        %v851 = vsub.s32 %v848, %v850
        %v852 = vrot.slane %v845, %v851
        %v853 = vcombine.high %v852, %v852
        %v855 = vunpack.c.l.s4 1966171168
        %v856 = vunpack.c.0.s8 %v855
        %v857 = vlaneseq
        %v858 = vshrl.u32 %v857, 7
        %v859 = vsub.s32 %v856, %v858
        %v860 = vrot.slane %v852, %v859
        %v862 = vunpack.c.l.s4 1966171168
        %v863 = vunpack.c.0.s8 %v862
        %v864 = vlaneseq
        %v865 = vshrl.u32 %v864, 7
        %v866 = vsub.s32 %v863, %v865
        %v867 = vrot.slane %v853, %v866
        %s870 = scalar_lea.vmem %s275, 2
        %871 = vst.msk [vmem:[%s870] ss:$4 sm:$0x3] %vm636, %v860
        %s872 = scalar_lea.vmem %s275, 10
        %873 = vst.msk [vmem:[%s872] ss:$4 sm:$0x3] %vm636, %v867
        %s874 = smul.u32 2, %s19
        %p875 = scmp.lt.s32.totalorder %s874, 3
        %s876 = scalar_select %p875, %s874, 3
        %s877 = smul.addr %s876, 2
        %s878 = smul.addr %s877, 4
        %s879 = scalar_lea.vmem %s4, %s878
        // Predicated region
        $region49: #{tpu_custom_call.1} parent=35 // pred_check
          %p880 = pneg %p126
        $region50: #{tpu_custom_call.1} parent=35 // pred_check_branch
          %882 = sbr.rel (%p880) target = $region52
        $region51: #{tpu_custom_call.1} parent=35 // pred_region
          %s883 = smul.u32 2, %s19
        $region52: #{tpu_custom_call.1} parent=35 // pred_fallthru
          _
      $region36: #{tpu_custom_call.1} parent=5 // pred_fallthru
        _
      %p884 = scmp.le.s32.totalorder 2, %s14
      // Predicated region
      $region53: #{tpu_custom_call.1} parent=5 // pred_check
        %p885 = pneg %p884
      $region54: #{tpu_custom_call.1} parent=5 // pred_check_branch
        %887 = sbr.rel (%p885) target = $region56
      $region55: #{tpu_custom_call.1} parent=5 // pred_region
        %s888 = ssub.s32 %s14, 2
        // Predicated region
        $region57: #{tpu_custom_call.1} parent=55 // pred_check
          %p889 = pneg %p132
        $region58: #{tpu_custom_call.1} parent=55 // pred_check_branch
          %891 = sbr.rel (%p889) target = $region60
        $region59: #{tpu_custom_call.1} parent=55 // pred_region
          %s892 = smul.u32 2, %s20
          %p893 = scmp.lt.s32.totalorder %s892, 3
          %s894 = scalar_select %p893, %s892, 3
          %s895 = smul.addr %s894, 2
          %s896 = smul.addr %s895, 4
          %s897 = scalar_lea.vmem %s4, %s896
        $region60: #{tpu_custom_call.1} parent=55 // pred_fallthru
          _
      $region56: #{tpu_custom_call.1} parent=5 // pred_fallthru
        _
    $region6: #{tpu_custom_call.1} parent=1 // loop_footer
      %s18 = sadd.s32 1, %s14
    $region7: #{tpu_custom_call.1} parent=1 // loop_footer_branch
      %13 = sbr.rel target = $region3
    $region8: #{tpu_custom_call.1} parent=1 // loop_exit
      _
    %898 = vsyncpa [#allocation3], 1
    %s899 = scalar_lea.sflag [#allocation3], 1
    %900 = vsyncpa %s899, 1
    %901 = vsyncpa [#allocation5], 1

</llo_original>
